<compile_context>
chip_gen: v7x
topology: tpu7x:2x2x1
jax: 0.10.0
libtpu: 0.0.40
codegen_flags: <defaults>
</compile_context>

<pallas_src>
import jax
import jax.numpy as jnp
from jax.experimental import pallas as pl
from jax.experimental.pallas import tpu as pltpu


def _crm_compute(content, color, wt_ref, b_ref, out_ref):
    """content/color: (C, S, 128) lane-dense slabs; wt/b live in SMEM."""
    c = content.shape[0]

    d = -content - color
    m = content * color
    # 2*sigmoid(d) == 1 + tanh(d/2): one EUP op instead of exp + reciprocal.
    l = jnp.clip((1.0 + jnp.tanh(0.5 * d)) * jnp.tanh(m), 0.0, 1.0)
    # (the sigmoid_D clamp in the PyTorch code is dead — its result is unused)

    # iteration 0
    f0 = l * color + content                        # (C, S, 128)

    # 1x1 conv == per-pixel CxC channel mix: C*C scalar-broadcast FMAs on
    # dense vregs, weights/bias read as SMEM scalars.
    for o in range(c):
        acc = f0[0] * wt_ref[o * c + 0]
        for ci in range(1, c):
            acc = acc + f0[ci] * wt_ref[o * c + ci]
        cc_o = jnp.maximum(acc + b_ref[o], 0.0)     # relu(conv1x1(f0))[o]
        # iteration 1 (its trailing conv output is never used by the module)
        f1_o = l[o] * cc_o + content[o]
        out_ref[0, o] = (0.5 * (f0[o] + f1_o)).astype(out_ref.dtype)


def _crm_kernel(content_ref, color_ref, wt_ref, b_ref, out_ref):
    _crm_compute(content_ref[0], color_ref[0], wt_ref, b_ref, out_ref)


def _crm_kernel_prior(content_ref, color_ref, prior_ref, wt_ref, b_ref, out_ref):
    # fused cpgb_prior add: +4 B/elem of read instead of a 12 B/elem XLA op
    _crm_compute(content_ref[0], color_ref[0] + prior_ref[0], wt_ref, b_ref, out_ref)


def _pick_spatial_rows(rows, c, n, lane=128, target_bytes=1 << 20):
    """Pick the 128-lane row count per tile (~target_bytes per input per tile)."""
    s_cap = max(8, (target_bytes // (c * lane * 4)) // 8 * 8)
    if rows <= s_cap:
        # whole spatial extent fits one block; split once so both v7x TCs get
        # work when the batch axis alone cannot provide 2 parallel steps.
        if n == 1 and rows >= 16 and rows % 16 == 0:
            return rows // 2
        return rows
    s = s_cap
    while s > 8 and rows % s != 0:
        s -= 8
    # if nothing divides, Pallas masks the ragged final spatial block
    return s


def color_recovery_module(content, color, weight, bias, cpgb_prior=None):
    """content/color/cpgb_prior: NCHW f32; weight: (C_out, C_in); bias: (C_out,)."""
    n, c, h, w = content.shape
    hw = h * w
    lane = 128

    # Free row-major reshape to (N, C, rows, 128); pad only to the next 128
    # multiple (and only when H*W is not already lane-aligned).
    hw_pad = pl.cdiv(hw, lane) * lane
    rows = hw_pad // lane

    def to_tiles(x):
        x3 = x.reshape(n, c, hw)
        if hw_pad != hw:
            x3 = jnp.pad(x3, ((0, 0), (0, 0), (0, hw_pad - hw)))
        return x3.reshape(n, c, rows, lane)

    inputs = [to_tiles(content), to_tiles(color)]
    kernel = _crm_kernel
    if cpgb_prior is not None:
        inputs.append(to_tiles(cpgb_prior))
        kernel = _crm_kernel_prior

    s = _pick_spatial_rows(rows, c, n)
    grid = (n, pl.cdiv(rows, s))

    tile_spec = pl.BlockSpec((1, c, s, lane), lambda b, si: (b, 0, si, 0))
    smem_spec = pl.BlockSpec(memory_space=pltpu.MemorySpace.SMEM)
    in_specs = [tile_spec] * len(inputs) + [smem_spec, smem_spec]

    elems = n * c * rows * lane
    cost = pl.CostEstimate(
        flops=elems * (14 + 2 * c),
        transcendentals=2 * elems,
        bytes_accessed=(len(inputs) + 1) * elems * 4 + (c * c + c) * 4,
    )

    out4 = pl.pallas_call(
        kernel,
        out_shape=jax.ShapeDtypeStruct((n, c, rows, lane), content.dtype),
        grid_spec=pltpu.PrefetchScalarGridSpec(
            num_scalar_prefetch=0,
            grid=grid,
            in_specs=in_specs,
            out_specs=pl.BlockSpec((1, c, s, lane), lambda b, si: (b, 0, si, 0)),
        ),
        compiler_params=pltpu.CompilerParams(
            dimension_semantics=("parallel", "parallel"),
            vmem_limit_bytes=32 * 1024 * 1024,
        ),
        cost_estimate=cost,
    )(*inputs, weight.reshape(c * c), bias)

    out = out4.reshape(n, c, hw_pad)
    if hw_pad != hw:
        out = out[:, :, :hw]
    return out.reshape(n, c, h, w)


def _reference(content, color, weight, bias, cpgb_prior=None):
    """Pure-JAX reference mirroring the PyTorch forward (NCHW)."""
    if cpgb_prior is not None:
        color = color + cpgb_prior
    d = -content - color
    m = content * color
    l = jnp.clip(2.0 * jax.nn.sigmoid(d) * jnp.tanh(m), 0.0, 1.0)
    outs = []
    current = color
    for _ in range(2):
        f_i = l * current + content
        outs.append(f_i)
        current = jnp.einsum("nchw,oc->nohw", f_i, weight) + bias[None, :, None, None]
        current = jax.nn.relu(current)
    return (outs[0] + outs[1]) / 2.0


if __name__ == "__main__":
    key = jax.random.PRNGKey(0)
    k1, k2, k3, k4, k5 = jax.random.split(key, 5)

    N, C, H, W = 2, 4, 16, 16
    content = jax.random.normal(k1, (N, C, H, W), dtype=jnp.float32)
    color = jax.random.normal(k2, (N, C, H, W), dtype=jnp.float32)
    cpgb_prior = jax.random.normal(k3, (N, C, H, W), dtype=jnp.float32) * 0.1

    # deterministic conv1x1 params (Conv2d(C, C, 1) -> weight (C, C, 1, 1), bias (C,))
    bound = 1.0 / (C ** 0.5)
    weight = jax.random.uniform(k4, (C, C), minval=-bound, maxval=bound,
                                dtype=jnp.float32)
    bias = jax.random.uniform(k5, (C,), minval=-bound, maxval=bound,
                              dtype=jnp.float32)

    out = color_recovery_module(content, color, weight, bias, cpgb_prior=cpgb_prior)
    out = jax.block_until_ready(out)
    ref = _reference(content, color, weight, bias, cpgb_prior=cpgb_prior)
    assert out.shape == (N, C, H, W)
    assert jnp.allclose(out, ref, atol=1e-5, rtol=1e-5), "mismatch vs reference"

    # also exercise the no-prior path
    out2 = jax.block_until_ready(color_recovery_module(content, color, weight, bias))
    ref2 = _reference(content, color, weight, bias)
    assert jnp.allclose(out2, ref2, atol=1e-5, rtol=1e-5), "mismatch (no prior)"

    print("KERNEL_OK")
</pallas_src>

<mosaic_0001>
module attributes {stable_mosaic.version = 11 : i64} {
  func.func @_crm_kernel_prior(%arg0: i32, %arg1: i32, %arg2: memref<1x4x2x128xf32, #tpu.memory_space<vmem>>, %arg3: memref<1x4x2x128xf32, #tpu.memory_space<vmem>>, %arg4: memref<1x4x2x128xf32, #tpu.memory_space<vmem>>, %arg5: memref<16xf32, #tpu.memory_space<smem>>, %arg6: memref<4xf32, #tpu.memory_space<smem>>, %arg7: memref<1x4x2x128xf32, #tpu.memory_space<vmem>>) attributes {dimension_semantics = [#tpu.dimension_semantics<parallel>, #tpu.dimension_semantics<parallel>], iteration_bounds = array<i64: 2, 1>, scalar_prefetch = 0 : i64, scratch_operands = 0 : i64, tpu.core_type = #tpu.core_type<tc>, window_params = [{transform_indices = @transform_0, window_bounds = array<i64: 1, 4, 2, 128>}, {transform_indices = @transform_1, window_bounds = array<i64: 1, 4, 2, 128>}, {transform_indices = @transform_2, window_bounds = array<i64: 1, 4, 2, 128>}, {transform_indices = @transform_3, window_bounds = array<i64: 16>}, {transform_indices = @transform_4, window_bounds = array<i64: 4>}, {transform_indices = @transform_5, window_bounds = array<i64: 1, 4, 2, 128>}]} {
    %c0 = arith.constant 0 : index
    %c0_0 = arith.constant 0 : index
    %c0_1 = arith.constant 0 : index
    %c0_2 = arith.constant 0 : index
    %0 = vector.load %arg2[%c0, %c0_0, %c0_1, %c0_2] : memref<1x4x2x128xf32, #tpu.memory_space<vmem>>, vector<1x4x2x128xf32>
    %1 = vector.shape_cast %0 : vector<1x4x2x128xf32> to vector<4x2x128xf32>
    %c0_3 = arith.constant 0 : index
    %c0_4 = arith.constant 0 : index
    %c0_5 = arith.constant 0 : index
    %c0_6 = arith.constant 0 : index
    %2 = vector.load %arg3[%c0_3, %c0_4, %c0_5, %c0_6] : memref<1x4x2x128xf32, #tpu.memory_space<vmem>>, vector<1x4x2x128xf32>
    %3 = vector.shape_cast %2 : vector<1x4x2x128xf32> to vector<4x2x128xf32>
    %c0_7 = arith.constant 0 : index
    %c0_8 = arith.constant 0 : index
    %c0_9 = arith.constant 0 : index
    %c0_10 = arith.constant 0 : index
    %4 = vector.load %arg4[%c0_7, %c0_8, %c0_9, %c0_10] : memref<1x4x2x128xf32, #tpu.memory_space<vmem>>, vector<1x4x2x128xf32>
    %5 = vector.shape_cast %4 : vector<1x4x2x128xf32> to vector<4x2x128xf32>
    %6 = arith.addf %3, %5 : vector<4x2x128xf32>
    %cst = arith.constant 0.000000e+00 : f32
    %7 = vector.broadcast %cst : f32 to vector<4x2x128xf32>
    %8 = arith.subf %7, %1 : vector<4x2x128xf32>
    %9 = arith.subf %8, %6 : vector<4x2x128xf32>
    %10 = arith.mulf %1, %6 : vector<4x2x128xf32>
    %cst_11 = arith.constant 5.000000e-01 : f32
    %11 = vector.broadcast %cst_11 : f32 to vector<4x2x128xf32>
    %12 = arith.mulf %11, %9 : vector<4x2x128xf32>
    %13 = math.tanh %12 : vector<4x2x128xf32>
    %cst_12 = arith.constant 1.000000e+00 : f32
    %14 = vector.broadcast %cst_12 : f32 to vector<4x2x128xf32>
    %15 = arith.addf %14, %13 : vector<4x2x128xf32>
    %16 = math.tanh %10 : vector<4x2x128xf32>
    %17 = arith.mulf %15, %16 : vector<4x2x128xf32>
    %cst_13 = arith.constant 0.000000e+00 : f32
    %cst_14 = arith.constant 1.000000e+00 : f32
    %18 = vector.broadcast %cst_13 : f32 to vector<4x2x128xf32>
    %19 = arith.maximumf %18, %17 : vector<4x2x128xf32>
    %20 = vector.broadcast %cst_14 : f32 to vector<4x2x128xf32>
    %21 = arith.minimumf %20, %19 : vector<4x2x128xf32>
    %22 = arith.mulf %21, %6 : vector<4x2x128xf32>
    %23 = arith.addf %22, %1 : vector<4x2x128xf32>
    %24 = vector.extract_strided_slice %23 {offsets = [0, 0, 0], sizes = [1, 2, 128], strides = [1, 1, 1]} : vector<4x2x128xf32> to vector<1x2x128xf32>
    %25 = vector.shape_cast %24 : vector<1x2x128xf32> to vector<2x128xf32>
    %c0_15 = arith.constant 0 : index
    %26 = memref.load %arg5[%c0_15] : memref<16xf32, #tpu.memory_space<smem>>
    %27 = vector.broadcast %26 : f32 to vector<2x128xf32>
    %28 = arith.mulf %25, %27 : vector<2x128xf32>
    %29 = vector.extract_strided_slice %23 {offsets = [1, 0, 0], sizes = [1, 2, 128], strides = [1, 1, 1]} : vector<4x2x128xf32> to vector<1x2x128xf32>
    %30 = vector.shape_cast %29 : vector<1x2x128xf32> to vector<2x128xf32>
    %c1 = arith.constant 1 : index
    %31 = memref.load %arg5[%c1] : memref<16xf32, #tpu.memory_space<smem>>
    %32 = vector.broadcast %31 : f32 to vector<2x128xf32>
    %33 = arith.mulf %30, %32 : vector<2x128xf32>
    %34 = arith.addf %28, %33 : vector<2x128xf32>
    %35 = vector.extract_strided_slice %23 {offsets = [2, 0, 0], sizes = [1, 2, 128], strides = [1, 1, 1]} : vector<4x2x128xf32> to vector<1x2x128xf32>
    %36 = vector.shape_cast %35 : vector<1x2x128xf32> to vector<2x128xf32>
    %c2 = arith.constant 2 : index
    %37 = memref.load %arg5[%c2] : memref<16xf32, #tpu.memory_space<smem>>
    %38 = vector.broadcast %37 : f32 to vector<2x128xf32>
    %39 = arith.mulf %36, %38 : vector<2x128xf32>
    %40 = arith.addf %34, %39 : vector<2x128xf32>
    %41 = vector.extract_strided_slice %23 {offsets = [3, 0, 0], sizes = [1, 2, 128], strides = [1, 1, 1]} : vector<4x2x128xf32> to vector<1x2x128xf32>
    %42 = vector.shape_cast %41 : vector<1x2x128xf32> to vector<2x128xf32>
    %c3 = arith.constant 3 : index
    %43 = memref.load %arg5[%c3] : memref<16xf32, #tpu.memory_space<smem>>
    %44 = vector.broadcast %43 : f32 to vector<2x128xf32>
    %45 = arith.mulf %42, %44 : vector<2x128xf32>
    %46 = arith.addf %40, %45 : vector<2x128xf32>
    %c0_16 = arith.constant 0 : index
    %47 = memref.load %arg6[%c0_16] : memref<4xf32, #tpu.memory_space<smem>>
    %48 = vector.broadcast %47 : f32 to vector<2x128xf32>
    %49 = arith.addf %46, %48 : vector<2x128xf32>
    %cst_17 = arith.constant 0.000000e+00 : f32
    %50 = vector.broadcast %cst_17 : f32 to vector<2x128xf32>
    %51 = arith.maximumf %49, %50 : vector<2x128xf32>
    %52 = vector.extract_strided_slice %21 {offsets = [0, 0, 0], sizes = [1, 2, 128], strides = [1, 1, 1]} : vector<4x2x128xf32> to vector<1x2x128xf32>
    %53 = vector.shape_cast %52 : vector<1x2x128xf32> to vector<2x128xf32>
    %54 = arith.mulf %53, %51 : vector<2x128xf32>
    %55 = vector.extract_strided_slice %1 {offsets = [0, 0, 0], sizes = [1, 2, 128], strides = [1, 1, 1]} : vector<4x2x128xf32> to vector<1x2x128xf32>
    %56 = vector.shape_cast %55 : vector<1x2x128xf32> to vector<2x128xf32>
    %57 = arith.addf %54, %56 : vector<2x128xf32>
    %58 = vector.extract_strided_slice %23 {offsets = [0, 0, 0], sizes = [1, 2, 128], strides = [1, 1, 1]} : vector<4x2x128xf32> to vector<1x2x128xf32>
    %59 = vector.shape_cast %58 : vector<1x2x128xf32> to vector<2x128xf32>
    %60 = arith.addf %59, %57 : vector<2x128xf32>
    %cst_18 = arith.constant 5.000000e-01 : f32
    %61 = vector.broadcast %cst_18 : f32 to vector<2x128xf32>
    %62 = arith.mulf %61, %60 : vector<2x128xf32>
    %c0_19 = arith.constant 0 : index
    %c0_20 = arith.constant 0 : index
    %c0_21 = arith.constant 0 : index
    %c0_22 = arith.constant 0 : index
    %63 = vector.load %arg7[%c0_19, %c0_20, %c0_21, %c0_22] : memref<1x4x2x128xf32, #tpu.memory_space<vmem>>, vector<1x1x2x128xf32>
    %64 = vector.shape_cast %63 : vector<1x1x2x128xf32> to vector<2x128xf32>
    %65 = vector.shape_cast %62 : vector<2x128xf32> to vector<1x1x2x128xf32>
    tpu.vector_store %arg7[%c0_19, %c0_20, %c0_21, %c0_22], %65 {strides = array<i32>} : memref<1x4x2x128xf32, #tpu.memory_space<vmem>>, vector<1x1x2x128xf32>,
    %66 = vector.extract_strided_slice %23 {offsets = [0, 0, 0], sizes = [1, 2, 128], strides = [1, 1, 1]} : vector<4x2x128xf32> to vector<1x2x128xf32>
    %67 = vector.shape_cast %66 : vector<1x2x128xf32> to vector<2x128xf32>
    %c4 = arith.constant 4 : index
    %68 = memref.load %arg5[%c4] : memref<16xf32, #tpu.memory_space<smem>>
    %69 = vector.broadcast %68 : f32 to vector<2x128xf32>
    %70 = arith.mulf %67, %69 : vector<2x128xf32>
    %71 = vector.extract_strided_slice %23 {offsets = [1, 0, 0], sizes = [1, 2, 128], strides = [1, 1, 1]} : vector<4x2x128xf32> to vector<1x2x128xf32>
    %72 = vector.shape_cast %71 : vector<1x2x128xf32> to vector<2x128xf32>
    %c5 = arith.constant 5 : index
    %73 = memref.load %arg5[%c5] : memref<16xf32, #tpu.memory_space<smem>>
    %74 = vector.broadcast %73 : f32 to vector<2x128xf32>
    %75 = arith.mulf %72, %74 : vector<2x128xf32>
    %76 = arith.addf %70, %75 : vector<2x128xf32>
    %77 = vector.extract_strided_slice %23 {offsets = [2, 0, 0], sizes = [1, 2, 128], strides = [1, 1, 1]} : vector<4x2x128xf32> to vector<1x2x128xf32>
    %78 = vector.shape_cast %77 : vector<1x2x128xf32> to vector<2x128xf32>
    %c6 = arith.constant 6 : index
    %79 = memref.load %arg5[%c6] : memref<16xf32, #tpu.memory_space<smem>>
    %80 = vector.broadcast %79 : f32 to vector<2x128xf32>
    %81 = arith.mulf %78, %80 : vector<2x128xf32>
    %82 = arith.addf %76, %81 : vector<2x128xf32>
    %83 = vector.extract_strided_slice %23 {offsets = [3, 0, 0], sizes = [1, 2, 128], strides = [1, 1, 1]} : vector<4x2x128xf32> to vector<1x2x128xf32>
    %84 = vector.shape_cast %83 : vector<1x2x128xf32> to vector<2x128xf32>
    %c7 = arith.constant 7 : index
    %85 = memref.load %arg5[%c7] : memref<16xf32, #tpu.memory_space<smem>>
    %86 = vector.broadcast %85 : f32 to vector<2x128xf32>
    %87 = arith.mulf %84, %86 : vector<2x128xf32>
    %88 = arith.addf %82, %87 : vector<2x128xf32>
    %c1_23 = arith.constant 1 : index
    %89 = memref.load %arg6[%c1_23] : memref<4xf32, #tpu.memory_space<smem>>
    %90 = vector.broadcast %89 : f32 to vector<2x128xf32>
    %91 = arith.addf %88, %90 : vector<2x128xf32>
    %cst_24 = arith.constant 0.000000e+00 : f32
    %92 = vector.broadcast %cst_24 : f32 to vector<2x128xf32>
    %93 = arith.maximumf %91, %92 : vector<2x128xf32>
    %94 = vector.extract_strided_slice %21 {offsets = [1, 0, 0], sizes = [1, 2, 128], strides = [1, 1, 1]} : vector<4x2x128xf32> to vector<1x2x128xf32>
    %95 = vector.shape_cast %94 : vector<1x2x128xf32> to vector<2x128xf32>
    %96 = arith.mulf %95, %93 : vector<2x128xf32>
    %97 = vector.extract_strided_slice %1 {offsets = [1, 0, 0], sizes = [1, 2, 128], strides = [1, 1, 1]} : vector<4x2x128xf32> to vector<1x2x128xf32>
    %98 = vector.shape_cast %97 : vector<1x2x128xf32> to vector<2x128xf32>
    %99 = arith.addf %96, %98 : vector<2x128xf32>
    %100 = vector.extract_strided_slice %23 {offsets = [1, 0, 0], sizes = [1, 2, 128], strides = [1, 1, 1]} : vector<4x2x128xf32> to vector<1x2x128xf32>
    %101 = vector.shape_cast %100 : vector<1x2x128xf32> to vector<2x128xf32>
    %102 = arith.addf %101, %99 : vector<2x128xf32>
    %cst_25 = arith.constant 5.000000e-01 : f32
    %103 = vector.broadcast %cst_25 : f32 to vector<2x128xf32>
    %104 = arith.mulf %103, %102 : vector<2x128xf32>
    %c0_26 = arith.constant 0 : index
    %c1_27 = arith.constant 1 : index
    %c0_28 = arith.constant 0 : index
    %c0_29 = arith.constant 0 : index
    %105 = vector.load %arg7[%c0_26, %c1_27, %c0_28, %c0_29] : memref<1x4x2x128xf32, #tpu.memory_space<vmem>>, vector<1x1x2x128xf32>
    %106 = vector.shape_cast %105 : vector<1x1x2x128xf32> to vector<2x128xf32>
    %107 = vector.shape_cast %104 : vector<2x128xf32> to vector<1x1x2x128xf32>
    tpu.vector_store %arg7[%c0_26, %c1_27, %c0_28, %c0_29], %107 {strides = array<i32>} : memref<1x4x2x128xf32, #tpu.memory_space<vmem>>, vector<1x1x2x128xf32>,
    %108 = vector.extract_strided_slice %23 {offsets = [0, 0, 0], sizes = [1, 2, 128], strides = [1, 1, 1]} : vector<4x2x128xf32> to vector<1x2x128xf32>
    %109 = vector.shape_cast %108 : vector<1x2x128xf32> to vector<2x128xf32>
    %c8 = arith.constant 8 : index
    %110 = memref.load %arg5[%c8] : memref<16xf32, #tpu.memory_space<smem>>
    %111 = vector.broadcast %110 : f32 to vector<2x128xf32>
    %112 = arith.mulf %109, %111 : vector<2x128xf32>
    %113 = vector.extract_strided_slice %23 {offsets = [1, 0, 0], sizes = [1, 2, 128], strides = [1, 1, 1]} : vector<4x2x128xf32> to vector<1x2x128xf32>
    %114 = vector.shape_cast %113 : vector<1x2x128xf32> to vector<2x128xf32>
    %c9 = arith.constant 9 : index
    %115 = memref.load %arg5[%c9] : memref<16xf32, #tpu.memory_space<smem>>
    %116 = vector.broadcast %115 : f32 to vector<2x128xf32>
    %117 = arith.mulf %114, %116 : vector<2x128xf32>
    %118 = arith.addf %112, %117 : vector<2x128xf32>
    %119 = vector.extract_strided_slice %23 {offsets = [2, 0, 0], sizes = [1, 2, 128], strides = [1, 1, 1]} : vector<4x2x128xf32> to vector<1x2x128xf32>
    %120 = vector.shape_cast %119 : vector<1x2x128xf32> to vector<2x128xf32>
    %c10 = arith.constant 10 : index
    %121 = memref.load %arg5[%c10] : memref<16xf32, #tpu.memory_space<smem>>
    %122 = vector.broadcast %121 : f32 to vector<2x128xf32>
    %123 = arith.mulf %120, %122 : vector<2x128xf32>
    %124 = arith.addf %118, %123 : vector<2x128xf32>
    %125 = vector.extract_strided_slice %23 {offsets = [3, 0, 0], sizes = [1, 2, 128], strides = [1, 1, 1]} : vector<4x2x128xf32> to vector<1x2x128xf32>
    %126 = vector.shape_cast %125 : vector<1x2x128xf32> to vector<2x128xf32>
    %c11 = arith.constant 11 : index
    %127 = memref.load %arg5[%c11] : memref<16xf32, #tpu.memory_space<smem>>
    %128 = vector.broadcast %127 : f32 to vector<2x128xf32>
    %129 = arith.mulf %126, %128 : vector<2x128xf32>
    %130 = arith.addf %124, %129 : vector<2x128xf32>
    %c2_30 = arith.constant 2 : index
    %131 = memref.load %arg6[%c2_30] : memref<4xf32, #tpu.memory_space<smem>>
    %132 = vector.broadcast %131 : f32 to vector<2x128xf32>
    %133 = arith.addf %130, %132 : vector<2x128xf32>
    %cst_31 = arith.constant 0.000000e+00 : f32
    %134 = vector.broadcast %cst_31 : f32 to vector<2x128xf32>
    %135 = arith.maximumf %133, %134 : vector<2x128xf32>
    %136 = vector.extract_strided_slice %21 {offsets = [2, 0, 0], sizes = [1, 2, 128], strides = [1, 1, 1]} : vector<4x2x128xf32> to vector<1x2x128xf32>
    %137 = vector.shape_cast %136 : vector<1x2x128xf32> to vector<2x128xf32>
    %138 = arith.mulf %137, %135 : vector<2x128xf32>
    %139 = vector.extract_strided_slice %1 {offsets = [2, 0, 0], sizes = [1, 2, 128], strides = [1, 1, 1]} : vector<4x2x128xf32> to vector<1x2x128xf32>
    %140 = vector.shape_cast %139 : vector<1x2x128xf32> to vector<2x128xf32>
    %141 = arith.addf %138, %140 : vector<2x128xf32>
    %142 = vector.extract_strided_slice %23 {offsets = [2, 0, 0], sizes = [1, 2, 128], strides = [1, 1, 1]} : vector<4x2x128xf32> to vector<1x2x128xf32>
    %143 = vector.shape_cast %142 : vector<1x2x128xf32> to vector<2x128xf32>
    %144 = arith.addf %143, %141 : vector<2x128xf32>
    %cst_32 = arith.constant 5.000000e-01 : f32
    %145 = vector.broadcast %cst_32 : f32 to vector<2x128xf32>
    %146 = arith.mulf %145, %144 : vector<2x128xf32>
    %c0_33 = arith.constant 0 : index
    %c2_34 = arith.constant 2 : index
    %c0_35 = arith.constant 0 : index
    %c0_36 = arith.constant 0 : index
    %147 = vector.load %arg7[%c0_33, %c2_34, %c0_35, %c0_36] : memref<1x4x2x128xf32, #tpu.memory_space<vmem>>, vector<1x1x2x128xf32>
    %148 = vector.shape_cast %147 : vector<1x1x2x128xf32> to vector<2x128xf32>
    %149 = vector.shape_cast %146 : vector<2x128xf32> to vector<1x1x2x128xf32>
    tpu.vector_store %arg7[%c0_33, %c2_34, %c0_35, %c0_36], %149 {strides = array<i32>} : memref<1x4x2x128xf32, #tpu.memory_space<vmem>>, vector<1x1x2x128xf32>,
    %150 = vector.extract_strided_slice %23 {offsets = [0, 0, 0], sizes = [1, 2, 128], strides = [1, 1, 1]} : vector<4x2x128xf32> to vector<1x2x128xf32>
    %151 = vector.shape_cast %150 : vector<1x2x128xf32> to vector<2x128xf32>
    %c12 = arith.constant 12 : index
    %152 = memref.load %arg5[%c12] : memref<16xf32, #tpu.memory_space<smem>>
    %153 = vector.broadcast %152 : f32 to vector<2x128xf32>
    %154 = arith.mulf %151, %153 : vector<2x128xf32>
    %155 = vector.extract_strided_slice %23 {offsets = [1, 0, 0], sizes = [1, 2, 128], strides = [1, 1, 1]} : vector<4x2x128xf32> to vector<1x2x128xf32>
    %156 = vector.shape_cast %155 : vector<1x2x128xf32> to vector<2x128xf32>
    %c13 = arith.constant 13 : index
    %157 = memref.load %arg5[%c13] : memref<16xf32, #tpu.memory_space<smem>>
    %158 = vector.broadcast %157 : f32 to vector<2x128xf32>
    %159 = arith.mulf %156, %158 : vector<2x128xf32>
    %160 = arith.addf %154, %159 : vector<2x128xf32>
    %161 = vector.extract_strided_slice %23 {offsets = [2, 0, 0], sizes = [1, 2, 128], strides = [1, 1, 1]} : vector<4x2x128xf32> to vector<1x2x128xf32>
    %162 = vector.shape_cast %161 : vector<1x2x128xf32> to vector<2x128xf32>
    %c14 = arith.constant 14 : index
    %163 = memref.load %arg5[%c14] : memref<16xf32, #tpu.memory_space<smem>>
    %164 = vector.broadcast %163 : f32 to vector<2x128xf32>
    %165 = arith.mulf %162, %164 : vector<2x128xf32>
    %166 = arith.addf %160, %165 : vector<2x128xf32>
    %167 = vector.extract_strided_slice %23 {offsets = [3, 0, 0], sizes = [1, 2, 128], strides = [1, 1, 1]} : vector<4x2x128xf32> to vector<1x2x128xf32>
    %168 = vector.shape_cast %167 : vector<1x2x128xf32> to vector<2x128xf32>
    %c15 = arith.constant 15 : index
    %169 = memref.load %arg5[%c15] : memref<16xf32, #tpu.memory_space<smem>>
    %170 = vector.broadcast %169 : f32 to vector<2x128xf32>
    %171 = arith.mulf %168, %170 : vector<2x128xf32>
    %172 = arith.addf %166, %171 : vector<2x128xf32>
    %c3_37 = arith.constant 3 : index
    %173 = memref.load %arg6[%c3_37] : memref<4xf32, #tpu.memory_space<smem>>
    %174 = vector.broadcast %173 : f32 to vector<2x128xf32>
    %175 = arith.addf %172, %174 : vector<2x128xf32>
    %cst_38 = arith.constant 0.000000e+00 : f32
    %176 = vector.broadcast %cst_38 : f32 to vector<2x128xf32>
    %177 = arith.maximumf %175, %176 : vector<2x128xf32>
    %178 = vector.extract_strided_slice %21 {offsets = [3, 0, 0], sizes = [1, 2, 128], strides = [1, 1, 1]} : vector<4x2x128xf32> to vector<1x2x128xf32>
    %179 = vector.shape_cast %178 : vector<1x2x128xf32> to vector<2x128xf32>
    %180 = arith.mulf %179, %177 : vector<2x128xf32>
    %181 = vector.extract_strided_slice %1 {offsets = [3, 0, 0], sizes = [1, 2, 128], strides = [1, 1, 1]} : vector<4x2x128xf32> to vector<1x2x128xf32>
    %182 = vector.shape_cast %181 : vector<1x2x128xf32> to vector<2x128xf32>
    %183 = arith.addf %180, %182 : vector<2x128xf32>
    %184 = vector.extract_strided_slice %23 {offsets = [3, 0, 0], sizes = [1, 2, 128], strides = [1, 1, 1]} : vector<4x2x128xf32> to vector<1x2x128xf32>
    %185 = vector.shape_cast %184 : vector<1x2x128xf32> to vector<2x128xf32>
    %186 = arith.addf %185, %183 : vector<2x128xf32>
    %cst_39 = arith.constant 5.000000e-01 : f32
    %187 = vector.broadcast %cst_39 : f32 to vector<2x128xf32>
    %188 = arith.mulf %187, %186 : vector<2x128xf32>
    %c0_40 = arith.constant 0 : index
    %c3_41 = arith.constant 3 : index
    %c0_42 = arith.constant 0 : index
    %c0_43 = arith.constant 0 : index
    %189 = vector.load %arg7[%c0_40, %c3_41, %c0_42, %c0_43] : memref<1x4x2x128xf32, #tpu.memory_space<vmem>>, vector<1x1x2x128xf32>
    %190 = vector.shape_cast %189 : vector<1x1x2x128xf32> to vector<2x128xf32>
    %191 = vector.shape_cast %188 : vector<2x128xf32> to vector<1x1x2x128xf32>
    tpu.vector_store %arg7[%c0_40, %c3_41, %c0_42, %c0_43], %191 {strides = array<i32>} : memref<1x4x2x128xf32, #tpu.memory_space<vmem>>, vector<1x1x2x128xf32>,
    return
  }
  func.func @transform_0(%arg0: i32, %arg1: i32) -> (i32, i32, i32, i32) {
    %c0_i32 = arith.constant 0 : i32
    %c0_i32_0 = arith.constant 0 : i32
    %c0_i32_1 = arith.constant 0 : i32
    return %arg0, %c0_i32, %arg1, %c0_i32_0 : i32, i32, i32, i32
  }
  func.func @transform_1(%arg0: i32, %arg1: i32) -> (i32, i32, i32, i32) {
    %c0_i32 = arith.constant 0 : i32
    %c0_i32_0 = arith.constant 0 : i32
    %c0_i32_1 = arith.constant 0 : i32
    return %arg0, %c0_i32, %arg1, %c0_i32_0 : i32, i32, i32, i32
  }
  func.func @transform_2(%arg0: i32, %arg1: i32) -> (i32, i32, i32, i32) {
    %c0_i32 = arith.constant 0 : i32
    %c0_i32_0 = arith.constant 0 : i32
    %c0_i32_1 = arith.constant 0 : i32
    return %arg0, %c0_i32, %arg1, %c0_i32_0 : i32, i32, i32, i32
  }
  func.func @transform_3(%arg0: i32, %arg1: i32) -> i32 {
    %c0_i32 = arith.constant 0 : i32
    %c0_i32_0 = arith.constant 0 : i32
    return %c0_i32 : i32
  }
  func.func @transform_4(%arg0: i32, %arg1: i32) -> i32 {
    %c0_i32 = arith.constant 0 : i32
    %c0_i32_0 = arith.constant 0 : i32
    return %c0_i32 : i32
  }
  func.func @transform_5(%arg0: i32, %arg1: i32) -> (i32, i32, i32, i32) {
    %c0_i32 = arith.constant 0 : i32
    %c0_i32_0 = arith.constant 0 : i32
    %c0_i32_1 = arith.constant 0 : i32
    return %arg0, %c0_i32, %arg1, %c0_i32_0 : i32, i32, i32, i32
  }
}

</mosaic_0001>

<llo_original>
// kernel: tpu_custom_call.1
$region0: #{tpu_custom_call.1}
  #allocation0 [shape = 'u32[]', space=smem, size = 0x4, offset = 0x4, fixed_abs, tag = 'smem constant byte address 0x4 - core index']
  #allocation1 [shape = 'u32[144,128]{1,0:T(1,128)}', space=vmem, size = 0x12000, scoped, tag = 'internal scratch']
  %s0 = inlined_call_operand.hbm [shape: f32[2,4,2,128], index: 0, kind: input, shape index: {}]
  %s1 = inlined_call_operand.hbm [shape: f32[2,4,2,128], index: 1, kind: input, shape index: {}]
  %s2 = inlined_call_operand.hbm [shape: f32[2,4,2,128], index: 2, kind: input, shape index: {}]
  %s3 = inlined_call_operand.vmem [shape: f32[16], index: 3, kind: input, shape index: {}]
  %s4 = inlined_call_operand.vmem [shape: f32[4], index: 4, kind: input, shape index: {}]
  %s5 = inlined_call_operand.hbm [shape: f32[2,4,2,128], index: 5, kind: output, shape index: {}]
  %s6 = sld [smem:[#allocation0]]
  $region73: #{tpu_custom_call.1} parent=0
    _
  %s8 = ssub.s32 1, %s6
  %s9 = scalar_select 0, %s8, %s6
  $region1: #{tpu_custom_call.1} parent=0
    #allocation2 [shape = 'u8[8192]{0}', space=vmem, size = 0x2000, scoped, tag = 'input window, operand 0']
    #allocation3 [shape = 's32[2]{0}', space=sflag, size = 0x8, scoped, tag = 'scoped memory for tpu_custom_call.1']
    #allocation4 [shape = 's32[2]{0}', space=sflag, size = 0x8, scoped, tag = 'scoped memory for tpu_custom_call.1']
    #allocation5 [shape = 's32[2]{0}', space=sflag, size = 0x8, scoped, tag = 'scoped memory for tpu_custom_call.1']
    #allocation6 [shape = 'u8[8192]{0}', space=vmem, size = 0x2000, scoped, tag = 'input window, operand 1']
    #allocation7 [shape = 's32[2]{0}', space=sflag, size = 0x8, scoped, tag = 'scoped memory for tpu_custom_call.1']
    #allocation8 [shape = 'u8[8192]{0}', space=vmem, size = 0x2000, scoped, tag = 'input window, operand 2']
    #allocation9 [shape = 'u8[512]{0}', space=smem, size = 0x200, scoped, tag = 'input window, operand 3, single buffered']
    #allocation10 [shape = 'u8[512]{0}', space=smem, size = 0x200, scoped, tag = 'input window, operand 4, single buffered']
    #allocation11 [shape = 's32[1]{0}', space=sflag, size = 0x4, scoped, tag = 'scoped memory for tpu_custom_call.1']
    #allocation12 [shape = 'u8[8192]{0}', space=vmem, size = 0x2000, scoped, tag = 'output window, operand 0']
    %10 = vsyncpa [#allocation3], 0
    %s11 = scalar_lea.sflag [#allocation3], 1
    %12 = vsyncpa %s11, 0
    %13 = vsyncpa [#allocation7], 0
    %s14 = scalar_lea.sflag [#allocation7], 1
    %15 = vsyncpa %s14, 0
    %16 = vsyncpa [#allocation5], 0
    %17 = vsyncpa [#allocation11], 0
    %18 = vsyncpa [#allocation4], 0
    %s19 = scalar_lea.sflag [#allocation4], 1
    %20 = vsyncpa %s19, 0
    loop: start=0, step=1, limit=4
    $region2: #{tpu_custom_call.1} parent=1 // loop_pre_header
      _
    $region3: #{tpu_custom_call.1} parent=1 // loop_header
      %s22 = sphi 0, %s26
      %p23 = scmp.ge.s32.totalorder %s22, 4
      %s29 = sphi 0, %s41
      %s30 = sphi 0, %s37
      %s31 = sphi 0, %s29
      %s32 = sphi 0, %s30
      %s33 = sphi 0, %s31
      %s34 = sphi 0, %s32
      %s46 = sphi 0, %s48
      %s49 = sphi 0, %s46
      %s50 = sphi 0, %s49
      %s66 = sphi 0, %s50
      %s74 = sphi 0, %s76
      %s77 = sphi 0, %s74
      %s78 = sphi 0, %s77
      %s94 = sphi 0, %s78
      %s102 = sphi 0, %s104
      %s105 = sphi 0, %s102
      %s106 = sphi 0, %s105
      %s122 = sphi 0, %s106
      %s126 = sphi 0, %s126
      %s128 = sphi 0, %s126
      %s129 = sphi 0, %s128
      %s143 = sphi 0, %s129
      %s147 = sphi 0, %s147
      %s149 = sphi 0, %s147
      %s150 = sphi 0, %s149
      %s164 = sphi 0, %s150
      %s172 = sphi 0, %s174
      %s175 = sphi 0, %s172
      %s176 = sphi 0, %s175
      %s192 = sphi 0, %s176
    $region4: #{tpu_custom_call.1} parent=1 // loop_header_branch
      %25 = sbr.rel (%p23) target = $region8
    $region5: #{tpu_custom_call.1} parent=1 // loop_body
      %s27 = ssub.s32 %s22, 1
      %s28 = ssub.s32 %s22, 2
      %s35 = sadd.s32 1, %s30
      %p36 = scmp.ge.s32.totalorder %s35, 1
      %s37 = scalar_select %p36, 0, %s35
      %s38 = sadd.s32 1, %s29
      %s39 = scalar_select %p36, %s38, %s29
      %p40 = scmp.ge.s32.totalorder %s39, 2
      %s41 = scalar_select %p40, 0, %s39
      %s42 = ssub.s32 %s29, %s41
      %s43 = ssub.s32 %s30, %s37
      %s44 = sor.u32 %s42, %s43
      %p45 = scmp.eq.s32.totalorder %s44, 0
      %s47 = sadd.s32 %s46, 1
      %s48 = scalar_select %p45, %s46, %s47
      %p51 = pneg %p45
      %p52 = scmp.eq.s32.totalorder %s22, 1
      %p53 = por %p51, %p52
      %p54 = scmp.ne.s32.totalorder %s46, %s49
      %p55 = scmp.eq.s32.totalorder %s22, 0
      %p56 = por %p54, %p55
      %p57 = scmp.ne.s32.totalorder %s46, %s49
      %p58 = scmp.eq.s32.totalorder %s27, 1
      %p59 = por %p57, %p58
      %p60 = scmp.ne.s32.totalorder %s49, %s50
      %p61 = scmp.eq.s32.totalorder %s27, 0
      %p62 = por %p60, %p61
      %p63 = scmp.ne.s32.totalorder %s49, %s50
      %p64 = scmp.eq.s32.totalorder %s28, 1
      %p65 = por %p63, %p64
      %p67 = scmp.ne.s32.totalorder %s50, %s66
      %p68 = scmp.eq.s32.totalorder %s28, 0
      %p69 = por %p67, %p68
      %s70 = ssub.s32 %s29, %s41
      %s71 = ssub.s32 %s30, %s37
      %s72 = sor.u32 %s70, %s71
      %p73 = scmp.eq.s32.totalorder %s72, 0
      %s75 = sadd.s32 %s74, 1
      %s76 = scalar_select %p73, %s74, %s75
      %p79 = pneg %p73
      %p80 = scmp.eq.s32.totalorder %s22, 1
      %p81 = por %p79, %p80
      %p82 = scmp.ne.s32.totalorder %s74, %s77
      %p83 = scmp.eq.s32.totalorder %s22, 0
      %p84 = por %p82, %p83
      %p85 = scmp.ne.s32.totalorder %s74, %s77
      %p86 = scmp.eq.s32.totalorder %s27, 1
      %p87 = por %p85, %p86
      %p88 = scmp.ne.s32.totalorder %s77, %s78
      %p89 = scmp.eq.s32.totalorder %s27, 0
      %p90 = por %p88, %p89
      %p91 = scmp.ne.s32.totalorder %s77, %s78
      %p92 = scmp.eq.s32.totalorder %s28, 1
      %p93 = por %p91, %p92
      %p95 = scmp.ne.s32.totalorder %s78, %s94
      %p96 = scmp.eq.s32.totalorder %s28, 0
      %p97 = por %p95, %p96
      %s98 = ssub.s32 %s29, %s41
      %s99 = ssub.s32 %s30, %s37
      %s100 = sor.u32 %s98, %s99
      %p101 = scmp.eq.s32.totalorder %s100, 0
      %s103 = sadd.s32 %s102, 1
      %s104 = scalar_select %p101, %s102, %s103
      %p107 = pneg %p101
      %p108 = scmp.eq.s32.totalorder %s22, 1
      %p109 = por %p107, %p108
      %p110 = scmp.ne.s32.totalorder %s102, %s105
      %p111 = scmp.eq.s32.totalorder %s22, 0
      %p112 = por %p110, %p111
      %p113 = scmp.ne.s32.totalorder %s102, %s105
      %p114 = scmp.eq.s32.totalorder %s27, 1
      %p115 = por %p113, %p114
      %p116 = scmp.ne.s32.totalorder %s105, %s106
      %p117 = scmp.eq.s32.totalorder %s27, 0
      %p118 = por %p116, %p117
      %p119 = scmp.ne.s32.totalorder %s105, %s106
      %p120 = scmp.eq.s32.totalorder %s28, 1
      %p121 = por %p119, %p120
      %p123 = scmp.ne.s32.totalorder %s106, %s122
      %p124 = scmp.eq.s32.totalorder %s28, 0
      %p125 = por %p123, %p124
      %s127 = sadd.s32 %s126, 1
      %p130 = scmp.eq.s32.totalorder %s22, 1
      %p131 = scmp.ne.s32.totalorder %s126, %s128
      %p132 = scmp.eq.s32.totalorder %s22, 0
      %p133 = por %p131, %p132
      %p134 = scmp.ne.s32.totalorder %s126, %s128
      %p135 = scmp.eq.s32.totalorder %s27, 1
      %p136 = por %p134, %p135
      %p137 = scmp.ne.s32.totalorder %s128, %s129
      %p138 = scmp.eq.s32.totalorder %s27, 0
      %p139 = por %p137, %p138
      %p140 = scmp.ne.s32.totalorder %s128, %s129
      %p141 = scmp.eq.s32.totalorder %s28, 1
      %p142 = por %p140, %p141
      %p144 = scmp.ne.s32.totalorder %s129, %s143
      %p145 = scmp.eq.s32.totalorder %s28, 0
      %p146 = por %p144, %p145
      %s148 = sadd.s32 %s147, 1
      %p151 = scmp.eq.s32.totalorder %s22, 1
      %p152 = scmp.ne.s32.totalorder %s147, %s149
      %p153 = scmp.eq.s32.totalorder %s22, 0
      %p154 = por %p152, %p153
      %p155 = scmp.ne.s32.totalorder %s147, %s149
      %p156 = scmp.eq.s32.totalorder %s27, 1
      %p157 = por %p155, %p156
      %p158 = scmp.ne.s32.totalorder %s149, %s150
      %p159 = scmp.eq.s32.totalorder %s27, 0
      %p160 = por %p158, %p159
      %p161 = scmp.ne.s32.totalorder %s149, %s150
      %p162 = scmp.eq.s32.totalorder %s28, 1
      %p163 = por %p161, %p162
      %p165 = scmp.ne.s32.totalorder %s150, %s164
      %p166 = scmp.eq.s32.totalorder %s28, 0
      %p167 = por %p165, %p166
      %s168 = ssub.s32 %s29, %s41
      %s169 = ssub.s32 %s30, %s37
      %s170 = sor.u32 %s168, %s169
      %p171 = scmp.eq.s32.totalorder %s170, 0
      %s173 = sadd.s32 %s172, 1
      %s174 = scalar_select %p171, %s172, %s173
      %p177 = pneg %p171
      %p178 = scmp.eq.s32.totalorder %s22, 1
      %p179 = por %p177, %p178
      %p180 = scmp.ne.s32.totalorder %s172, %s175
      %p181 = scmp.eq.s32.totalorder %s22, 0
      %p182 = por %p180, %p181
      %p183 = scmp.ne.s32.totalorder %s172, %s175
      %p184 = scmp.eq.s32.totalorder %s27, 1
      %p185 = por %p183, %p184
      %p186 = scmp.ne.s32.totalorder %s175, %s176
      %p187 = scmp.eq.s32.totalorder %s27, 0
      %p188 = por %p186, %p187
      %p189 = scmp.ne.s32.totalorder %s175, %s176
      %p190 = scmp.eq.s32.totalorder %s28, 1
      %p191 = por %p189, %p190
      %p193 = scmp.ne.s32.totalorder %s176, %s192
      %p194 = scmp.eq.s32.totalorder %s28, 0
      %p195 = por %p193, %p194
      %p196 = scmp.le.s32.totalorder 1, %s22
      %p197 = scmp.lt.s32.totalorder %s22, 3
      %p198 = pnand %p196, %p197
      %p199 = pneg %p198
      // Predicated region
      $region9: #{tpu_custom_call.1} parent=5 // pred_check
        _
      $region10: #{tpu_custom_call.1} parent=5 // pred_check_branch
        %201 = sbr.rel (%p198) target = $region12
      $region11: #{tpu_custom_call.1} parent=5 // pred_region
        %s202 = ssub.s32 %s22, 1
        // Predicated region
        $region13: #{tpu_custom_call.1} parent=11 // pred_check
          %p203 = pneg %p139
        $region14: #{tpu_custom_call.1} parent=11 // pred_check_branch
          %205 = sbr.rel (%p203) target = $region16
        $region15: #{tpu_custom_call.1} parent=11 // pred_region
          %s207 = ssub.s32 16, 16
          %208 = vsyncadd [#allocation5], %s207
          %s210 = sshll.u32 %s3, 4
          %s211 = int_to_ptr.vmem [resolvable:$true] %s210
          %213 = dma.vmem_to_smem %s211, 16, [#allocation9], [#allocation5]
        $region16: #{tpu_custom_call.1} parent=11 // pred_fallthru
          _
        // Predicated region
        $region17: #{tpu_custom_call.1} parent=11 // pred_check
          %p214 = pneg %p160
        $region18: #{tpu_custom_call.1} parent=11 // pred_check_branch
          %216 = sbr.rel (%p214) target = $region20
        $region19: #{tpu_custom_call.1} parent=11 // pred_region
          %s218 = ssub.s32 16, 16
          %219 = vsyncadd [#allocation11], %s218
          %s221 = sshll.u32 %s4, 4
          %s222 = int_to_ptr.vmem [resolvable:$true] %s221
          %224 = dma.vmem_to_smem %s222, 16, [#allocation10], [#allocation11]
        $region20: #{tpu_custom_call.1} parent=11 // pred_fallthru
          _
      $region12: #{tpu_custom_call.1} parent=5 // pred_fallthru
        _
      %p225 = scmp.lt.s32.totalorder %s22, 2
      // Predicated region
      $region21: #{tpu_custom_call.1} parent=5 // pred_check
        %p226 = pneg %p225
      $region22: #{tpu_custom_call.1} parent=5 // pred_check_branch
        %228 = sbr.rel (%p226) target = $region24
      $region23: #{tpu_custom_call.1} parent=5 // pred_region
        // Predicated region
        $region25: #{tpu_custom_call.1} parent=23 // pred_check
          %p229 = pneg %p56
        $region26: #{tpu_custom_call.1} parent=23 // pred_check_branch
          %231 = sbr.rel (%p229) target = $region28
        $region27: #{tpu_custom_call.1} parent=23 // pred_region
          %s232 = sand.u32 %s46, 1
          %s233 = scalar_lea.sflag [#allocation3], %s232
          %s234 = sand.u32 %s46, 1
          %s235 = smul.addr %s234, 8
          %s236 = scalar_lea.vmem [#allocation2], %s235
          %s238 = ssub.s32 128, 128
          %239 = vsyncadd %s233, %s238
          %s240 = smul.addr %s29, 4
          %s241 = sadd.s32 %s30, %s240
          %s242 = smul.addr %s241, 32
          %s243 = scalar_lea.hbm %s0, %s242
          %s244 = sshll.u32 %s236, 4
          %s245 = int_to_ptr.vmem [resolvable:$true] %s244
          %250 = dma.hbm_to_vmem [thread:$0]  %s243, 128, %s245, %s233, 32, 32, 2
        $region28: #{tpu_custom_call.1} parent=23 // pred_fallthru
          _
        // Predicated region
        $region29: #{tpu_custom_call.1} parent=23 // pred_check
          %p251 = pneg %p84
        $region30: #{tpu_custom_call.1} parent=23 // pred_check_branch
          %253 = sbr.rel (%p251) target = $region32
        $region31: #{tpu_custom_call.1} parent=23 // pred_region
          %s254 = sand.u32 %s22, 1
          %s255 = scalar_lea.sflag [#allocation7], %s254
          %s256 = sand.u32 %s74, 1
          %s257 = smul.addr %s256, 8
          %s258 = scalar_lea.vmem [#allocation6], %s257
          %s260 = ssub.s32 128, 128
          %261 = vsyncadd %s255, %s260
          %s262 = smul.addr %s29, 4
          %s263 = sadd.s32 %s30, %s262
          %s264 = smul.addr %s263, 32
          %s265 = scalar_lea.hbm %s1, %s264
          %s266 = sshll.u32 %s258, 4
          %s267 = int_to_ptr.vmem [resolvable:$true] %s266
          %272 = dma.hbm_to_vmem [thread:$0]  %s265, 128, %s267, %s255, 32, 32, 2
        $region32: #{tpu_custom_call.1} parent=23 // pred_fallthru
          _
        // Predicated region
        $region33: #{tpu_custom_call.1} parent=23 // pred_check
          %p273 = pneg %p112
        $region34: #{tpu_custom_call.1} parent=23 // pred_check_branch
          %275 = sbr.rel (%p273) target = $region36
        $region35: #{tpu_custom_call.1} parent=23 // pred_region
          %s276 = sand.u32 %s22, 1
          %s277 = scalar_lea.sflag [#allocation7], %s276
          %s278 = sand.u32 %s102, 1
          %s279 = smul.addr %s278, 8
          %s280 = scalar_lea.vmem [#allocation8], %s279
          %s282 = ssub.s32 128, 128
          %283 = vsyncadd %s277, %s282
          %s284 = smul.addr %s29, 4
          %s285 = sadd.s32 %s30, %s284
          %s286 = smul.addr %s285, 32
          %s287 = scalar_lea.hbm %s2, %s286
          %s288 = sshll.u32 %s280, 4
          %s289 = int_to_ptr.vmem [resolvable:$true] %s288
          %294 = dma.hbm_to_vmem [thread:$0]  %s287, 128, %s289, %s277, 32, 32, 2
        $region36: #{tpu_custom_call.1} parent=23 // pred_fallthru
          _
      $region24: #{tpu_custom_call.1} parent=5 // pred_fallthru
        _
      %p295 = scmp.le.s32.totalorder 1, %s22
      %p296 = scmp.lt.s32.totalorder %s22, 3
      %p297 = pnand %p295, %p296
      %p298 = pneg %p297
      // Predicated region
      $region37: #{tpu_custom_call.1} parent=5 // pred_check
        _
      $region38: #{tpu_custom_call.1} parent=5 // pred_check_branch
        %300 = sbr.rel (%p297) target = $region40
      $region39: #{tpu_custom_call.1} parent=5 // pred_region
        %s301 = ssub.s32 %s22, 1
        %s302 = sand.u32 %s49, 1
        %s303 = scalar_lea.sflag [#allocation3], %s302
        %s304 = sand.u32 %s49, 1
        %s305 = smul.addr %s304, 8
        %s306 = scalar_lea.vmem [#allocation2], %s305
        // Predicated region
        $region41: #{tpu_custom_call.1} parent=39 // pred_check
          %p307 = pneg %p62
        $region42: #{tpu_custom_call.1} parent=39 // pred_check_branch
          %309 = sbr.rel (%p307) target = $region44
        $region43: #{tpu_custom_call.1} parent=39 // pred_region
          %310 = dma.done %s303, 128
        $region44: #{tpu_custom_call.1} parent=39 // pred_fallthru
          _
        %s311 = sand.u32 %s27, 1
        %s312 = scalar_lea.sflag [#allocation7], %s311
        %s313 = sand.u32 %s77, 1
        %s314 = smul.addr %s313, 8
        %s315 = scalar_lea.vmem [#allocation6], %s314
        // Predicated region
        $region45: #{tpu_custom_call.1} parent=39 // pred_check
          %p316 = pneg %p90
        $region46: #{tpu_custom_call.1} parent=39 // pred_check_branch
          %318 = sbr.rel (%p316) target = $region48
        $region47: #{tpu_custom_call.1} parent=39 // pred_region
          %319 = dma.done %s312, 128
        $region48: #{tpu_custom_call.1} parent=39 // pred_fallthru
          _
        %s320 = sand.u32 %s27, 1
        %s321 = scalar_lea.sflag [#allocation7], %s320
        %s322 = sand.u32 %s105, 1
        %s323 = smul.addr %s322, 8
        %s324 = scalar_lea.vmem [#allocation8], %s323
        // Predicated region
        $region49: #{tpu_custom_call.1} parent=39 // pred_check
          %p325 = pneg %p118
        $region50: #{tpu_custom_call.1} parent=39 // pred_check_branch
          %327 = sbr.rel (%p325) target = $region52
        $region51: #{tpu_custom_call.1} parent=39 // pred_region
          %328 = dma.done %s321, 128
        $region52: #{tpu_custom_call.1} parent=39 // pred_fallthru
          _
        // Predicated region
        $region53: #{tpu_custom_call.1} parent=39 // pred_check
          %p329 = pneg %p139
        $region54: #{tpu_custom_call.1} parent=39 // pred_check_branch
          %331 = sbr.rel (%p329) target = $region56
        $region55: #{tpu_custom_call.1} parent=39 // pred_region
          %332 = dma.done [#allocation5], 16
        $region56: #{tpu_custom_call.1} parent=39 // pred_fallthru
          _
        // Predicated region
        $region57: #{tpu_custom_call.1} parent=39 // pred_check
          %p333 = pneg %p160
        $region58: #{tpu_custom_call.1} parent=39 // pred_check_branch
          %335 = sbr.rel (%p333) target = $region60
        $region59: #{tpu_custom_call.1} parent=39 // pred_region
          %336 = dma.done [#allocation11], 16
        $region60: #{tpu_custom_call.1} parent=39 // pred_fallthru
          _
        %337 = sfence
        %s338 = sand.u32 %s49, 1
        %s339 = scalar_lea.sflag [#allocation3], %s338
        %s340 = sand.u32 %s49, 1
        %s341 = smul.addr %s340, 8
        %s342 = scalar_lea.vmem [#allocation2], %s341
        %p343 = pneg %p62
        %p344 = pneg %p59
        %s345 = sand.u32 %s27, 1
        %s346 = scalar_lea.sflag [#allocation7], %s345
        %s347 = sand.u32 %s77, 1
        %s348 = smul.addr %s347, 8
        %s349 = scalar_lea.vmem [#allocation6], %s348
        %p350 = pneg %p90
        %p351 = pneg %p87
        %s352 = sand.u32 %s27, 1
        %s353 = scalar_lea.sflag [#allocation7], %s352
        %s354 = sand.u32 %s105, 1
        %s355 = smul.addr %s354, 8
        %s356 = scalar_lea.vmem [#allocation8], %s355
        %p357 = pneg %p118
        %p358 = pneg %p115
        %p359 = pneg %p139
        %p360 = pneg %p136
        %p361 = pneg %p160
        %p362 = pneg %p157
        %p363 = pneg %p188
        %p364 = pneg %p185
        %s365 = sand.u32 %s175, 1
        %s366 = scalar_lea.sflag [#allocation4], %s365
        %s367 = sand.u32 %s175, 1
        %s368 = smul.addr %s367, 8
        %s369 = scalar_lea.vmem [#allocation12], %s368
        %v370 = vld [vmem:[%s306] sm:$0x3]
        %v371 = vld [vmem:[%s306 + $0x2] sm:$0x3]
        %v372 = vld [vmem:[%s306 + $0x4] sm:$0x3]
        %v373 = vld [vmem:[%s306 + $0x6] sm:$0x3]
        %v374 = vld [vmem:[%s315] sm:$0x3]
        %v375 = vld [vmem:[%s315 + $0x2] sm:$0x3]
        %v376 = vld [vmem:[%s315 + $0x4] sm:$0x3]
        %v377 = vld [vmem:[%s315 + $0x6] sm:$0x3]
        %v378 = vld [vmem:[%s324] sm:$0x3]
        %v379 = vld [vmem:[%s324 + $0x2] sm:$0x3]
        %v380 = vld [vmem:[%s324 + $0x4] sm:$0x3]
        %v381 = vld [vmem:[%s324 + $0x6] sm:$0x3]
        %v382 = vadd.f32 %v374, %v378
        %v383 = vadd.f32 %v375, %v379
        %v384 = vadd.f32 %v376, %v380
        %v385 = vadd.f32 %v377, %v381
        %v386 = vsub.f32 0.0, %v370
        %v387 = vsub.f32 0.0, %v371
        %v388 = vsub.f32 0.0, %v372
        %v389 = vsub.f32 0.0, %v373
        %v390 = vsub.f32 %v386, %v382
        %v391 = vsub.f32 %v387, %v383
        %v392 = vsub.f32 %v388, %v384
        %v393 = vsub.f32 %v389, %v385
        %v394 = vmul.f32 %v370, %v382
        %v395 = vmul.f32 %v371, %v383
        %v396 = vmul.f32 %v372, %v384
        %v397 = vmul.f32 %v373, %v385
        %v398 = vmul.f32 %v390, 0.5
        %v399 = vmul.f32 %v391, 0.5
        %v400 = vmul.f32 %v392, 0.5
        %v401 = vmul.f32 %v393, 0.5
        %v402 = vtanh.pop %v398
        %v403 = vtanh.pop %v399
        %v404 = vtanh.pop %v400
        %v405 = vtanh.pop %v401
        %v406 = vadd.f32 %v402, 1.0
        %v407 = vadd.f32 %v403, 1.0
        %v408 = vadd.f32 %v404, 1.0
        %v409 = vadd.f32 %v405, 1.0
        %v410 = vtanh.pop %v394
        %v411 = vtanh.pop %v395
        %v412 = vtanh.pop %v396
        %v413 = vtanh.pop %v397
        %v414 = vmul.f32 %v406, %v410
        %v415 = vmul.f32 %v407, %v411
        %v416 = vmul.f32 %v408, %v412
        %v417 = vmul.f32 %v409, %v413
        %v418 = vmax.f32 %v414, 0.0
        %v419 = vmax.f32 %v415, 0.0
        %v420 = vmax.f32 %v416, 0.0
        %v421 = vmax.f32 %v417, 0.0
        %v422 = vmin.f32 %v418, 1.0
        %v423 = vmin.f32 %v419, 1.0
        %v424 = vmin.f32 %v420, 1.0
        %v425 = vmin.f32 %v421, 1.0
        %v426 = vmul.f32 %v422, %v382
        %v427 = vmul.f32 %v423, %v383
        %v428 = vmul.f32 %v424, %v384
        %v429 = vmul.f32 %v425, %v385
        %v430 = vadd.f32 %v426, %v370
        %v431 = vadd.f32 %v427, %v371
        %v432 = vadd.f32 %v428, %v372
        %v433 = vadd.f32 %v429, %v373
        %s434 = sld [smem:[#allocation9]]
        %v435 = vstv %s434
        %v436 = vmul.f32 %v430, %v435
        %s437 = sld [smem:[#allocation9 + $0x1]]
        %v438 = vstv %s437
        %v439 = vmul.f32 %v431, %v438
        %v440 = vadd.f32 %v436, %v439
        %s441 = sld [smem:[#allocation9 + $0x2]]
        %v442 = vstv %s441
        %v443 = vmul.f32 %v432, %v442
        %v444 = vadd.f32 %v440, %v443
        %s445 = sld [smem:[#allocation9 + $0x3]]
        %v446 = vstv %s445
        %v447 = vmul.f32 %v433, %v446
        %v448 = vadd.f32 %v444, %v447
        %s449 = sld [smem:[#allocation10]]
        %v450 = vstv %s449
        %v451 = vadd.f32 %v448, %v450
        %v452 = vmax.f32 %v451, 0.0
        %v453 = vmul.f32 %v422, %v452
        %v454 = vadd.f32 %v453, %v370
        %v455 = vadd.f32 %v430, %v454
        %v456 = vmul.f32 %v455, 0.5
        %457 = vst [vmem:[%s369] sm:$0x3] %v456
        %s458 = sld [smem:[#allocation9 + $0x4]]
        %v459 = vstv %s458
        %v460 = vmul.f32 %v430, %v459
        %s461 = sld [smem:[#allocation9 + $0x5]]
        %v462 = vstv %s461
        %v463 = vmul.f32 %v431, %v462
        %v464 = vadd.f32 %v460, %v463
        %s465 = sld [smem:[#allocation9 + $0x6]]
        %v466 = vstv %s465
        %v467 = vmul.f32 %v432, %v466
        %v468 = vadd.f32 %v464, %v467
        %s469 = sld [smem:[#allocation9 + $0x7]]
        %v470 = vstv %s469
        %v471 = vmul.f32 %v433, %v470
        %v472 = vadd.f32 %v468, %v471
        %s473 = sld [smem:[#allocation10 + $0x1]]
        %v474 = vstv %s473
        %v475 = vadd.f32 %v472, %v474
        %v476 = vmax.f32 %v475, 0.0
        %v477 = vmul.f32 %v423, %v476
        %v478 = vadd.f32 %v477, %v371
        %v479 = vadd.f32 %v431, %v478
        %v480 = vmul.f32 %v479, 0.5
        %s481 = scalar_lea.vmem %s369, 2 [#allocation12]
        %482 = vst [vmem:[%s481] sm:$0x3] %v480
        %s483 = sld [smem:[#allocation9 + $0x8]]
        %v484 = vstv %s483
        %v485 = vmul.f32 %v430, %v484
        %s486 = sld [smem:[#allocation9 + $0x9]]
        %v487 = vstv %s486
        %v488 = vmul.f32 %v431, %v487
        %v489 = vadd.f32 %v485, %v488
        %s490 = sld [smem:[#allocation9 + $0xa]]
        %v491 = vstv %s490
        %v492 = vmul.f32 %v432, %v491
        %v493 = vadd.f32 %v489, %v492
        %s494 = sld [smem:[#allocation9 + $0xb]]
        %v495 = vstv %s494
        %v496 = vmul.f32 %v433, %v495
        %v497 = vadd.f32 %v493, %v496
        %s498 = sld [smem:[#allocation10 + $0x2]]
        %v499 = vstv %s498
        %v500 = vadd.f32 %v497, %v499
        %v501 = vmax.f32 %v500, 0.0
        %v502 = vmul.f32 %v424, %v501
        %v503 = vadd.f32 %v502, %v372
        %v504 = vadd.f32 %v432, %v503
        %v505 = vmul.f32 %v504, 0.5
        %s506 = scalar_lea.vmem %s369, 4 [#allocation12]
        %507 = vst [vmem:[%s506] sm:$0x3] %v505
        %s508 = sld [smem:[#allocation9 + $0xc]]
        %v509 = vstv %s508
        %v510 = vmul.f32 %v430, %v509
        %s511 = sld [smem:[#allocation9 + $0xd]]
        %v512 = vstv %s511
        %v513 = vmul.f32 %v431, %v512
        %v514 = vadd.f32 %v510, %v513
        %s515 = sld [smem:[#allocation9 + $0xe]]
        %v516 = vstv %s515
        %v517 = vmul.f32 %v432, %v516
        %v518 = vadd.f32 %v514, %v517
        %s519 = sld [smem:[#allocation9 + $0xf]]
        %v520 = vstv %s519
        %v521 = vmul.f32 %v433, %v520
        %v522 = vadd.f32 %v518, %v521
        %s523 = sld [smem:[#allocation10 + $0x3]]
        %v524 = vstv %s523
        %v525 = vadd.f32 %v522, %v524
        %v526 = vmax.f32 %v525, 0.0
        %v527 = vmul.f32 %v425, %v526
        %v528 = vadd.f32 %v527, %v373
        %v529 = vadd.f32 %v433, %v528
        %v530 = vmul.f32 %v529, 0.5
        %s531 = scalar_lea.vmem %s369, 6 [#allocation12]
        %532 = vst [vmem:[%s531] sm:$0x3] %v530
        %s533 = sand.u32 %s175, 1
        %s534 = scalar_lea.sflag [#allocation4], %s533
        %s535 = sand.u32 %s175, 1
        %s536 = smul.addr %s535, 8
        %s537 = scalar_lea.vmem [#allocation12], %s536
        // Predicated region
        $region61: #{tpu_custom_call.1} parent=39 // pred_check
          %p538 = pneg %p185
        $region62: #{tpu_custom_call.1} parent=39 // pred_check_branch
          %540 = sbr.rel (%p538) target = $region64
        $region63: #{tpu_custom_call.1} parent=39 // pred_region
          %s542 = ssub.s32 128, 128
          %543 = vsyncadd %s534, %s542
          %s544 = smul.addr %s31, 4
          %s545 = sadd.s32 %s32, %s544
          %s546 = smul.addr %s545, 32
          %s547 = scalar_lea.hbm %s5, %s546
          %s548 = sshll.u32 %s537, 4
          %s549 = int_to_ptr.vmem [resolvable:$true] %s548
          %554 = dma.vmem_to_hbm [thread:$0]  %s549, 128, %s547, %s534, 32, 32, 2
        $region64: #{tpu_custom_call.1} parent=39 // pred_fallthru
          _
      $region40: #{tpu_custom_call.1} parent=5 // pred_fallthru
        _
      %p555 = scmp.le.s32.totalorder 2, %s22
      // Predicated region
      $region65: #{tpu_custom_call.1} parent=5 // pred_check
        %p556 = pneg %p555
      $region66: #{tpu_custom_call.1} parent=5 // pred_check_branch
        %558 = sbr.rel (%p556) target = $region68
      $region67: #{tpu_custom_call.1} parent=5 // pred_region
        %s559 = ssub.s32 %s22, 2
        // Predicated region
        $region69: #{tpu_custom_call.1} parent=67 // pred_check
          %p560 = pneg %p191
        $region70: #{tpu_custom_call.1} parent=67 // pred_check_branch
          %562 = sbr.rel (%p560) target = $region72
        $region71: #{tpu_custom_call.1} parent=67 // pred_region
          %s563 = sand.u32 %s176, 1
          %s564 = scalar_lea.sflag [#allocation4], %s563
          %s565 = sand.u32 %s176, 1
          %s566 = smul.addr %s565, 8
          %s567 = scalar_lea.vmem [#allocation12], %s566
          %568 = dma.done %s564, 128
        $region72: #{tpu_custom_call.1} parent=67 // pred_fallthru
          _
      $region68: #{tpu_custom_call.1} parent=5 // pred_fallthru
        _
    $region6: #{tpu_custom_call.1} parent=1 // loop_footer
      %s26 = sadd.s32 1, %s22
    $region7: #{tpu_custom_call.1} parent=1 // loop_footer_branch
      %21 = sbr.rel target = $region3
    $region8: #{tpu_custom_call.1} parent=1 // loop_exit
      _
    %569 = vsyncpa [#allocation3], 1
    %s570 = scalar_lea.sflag [#allocation3], 1
    %571 = vsyncpa %s570, 1
    %572 = vsyncpa [#allocation7], 1
    %s573 = scalar_lea.sflag [#allocation7], 1
    %574 = vsyncpa %s573, 1
    %575 = vsyncpa [#allocation4], 1
    %s576 = scalar_lea.sflag [#allocation4], 1
    %577 = vsyncpa %s576, 1
    %578 = vsyncpa [#allocation5], 1
    %s579 = scalar_lea.sflag [#allocation5], 1
    %580 = vsyncpa %s579, 1
    %581 = vsyncpa [#allocation11], 1

</llo_original>
